<compile_context>
chip_gen: v5e
topology: v5e:2x2
jax: 0.10.0
libtpu: 0.0.40
codegen_flags: <defaults>
</compile_context>

<pallas_src>
import jax
import jax.numpy as jnp
import numpy as np
from jax.experimental import pallas as pl
from jax.experimental.pallas import tpu as pltpu

IN_CHANNELS = 4
OUT_CHANNELS = 12            # must be divisible by 3 (linear in-features == concat channels)
OCL = OUT_CHANNELS // 3
L = 16                       # sequence length
N = 2                        # batch
KMAX = 5                     # widest conv
PAD_MAX = KMAX // 2          # padding needed by the widest conv
LP = L + 2 * PAD_MAX
KDIM = KMAX * IN_CHANNELS    # im2col feature width (= 20)
LIN_OUT = 20


def user_net_kernel(x_ref, wa_ref, wb_ref, o_ref):
    # x_ref : (N*L, KDIM)        im2col'd input, batch folded into the row dim
    # wa_ref: (KDIM+1, 3*OCL)    [fused conv weight ; conv bias row]
    # wb_ref: (3*OCL+1, LIN_OUT) [linear weight ; linear bias row]
    # o_ref : (N, LIN_OUT)
    x = x_ref[...]
    wa = wa_ref[...]
    wb = wb_ref[...]

    wc = wa[0:KDIM, :]                          # (20, 12)
    bc = wa[KDIM:KDIM + 1, :]                   # (1, 12)

    # conv1 + conv2 + conv3 ("same" padding) + sigmoid as ONE matmul
    y = jax.nn.sigmoid(
        jnp.dot(x, wc, preferred_element_type=jnp.float32) + bc)   # (N*L, 12)

    # max over the length axis, per batch element (static, sublane-aligned slices)
    m = jnp.concatenate(
        [jnp.max(y[n * L:(n + 1) * L, :], axis=0, keepdims=True) for n in range(N)],
        axis=0)                                 # (N, 12)

    wl = wb[0:OUT_CHANNELS, :]                  # (12, 20)
    bl = wb[OUT_CHANNELS:OUT_CHANNELS + 1, :]   # (1, 20)
    o_ref[...] = jax.nn.sigmoid(
        jnp.dot(m, wl, preferred_element_type=jnp.float32) + bl)   # (N, 20)


def pack_params(params):
    """Host-side repack: fuse the 3 conv branches into one (KDIM, 3*OCL) weight
    (rows for taps a branch doesn't use are zero), append each bias as an extra
    row so the kernel needs only 2 parameter DMAs and static in-kernel slices."""
    w1, b1, w3, b3, w5, b5, wl, bl = params
    wc = jnp.zeros((KDIM, OUT_CHANNELS), jnp.float32)
    # k=5 branch: taps 0..4 -> rows 0:20, cols [2*OCL:3*OCL]
    wc = wc.at[:, 2 * OCL:3 * OCL].set(w5.reshape(KDIM, OCL))
    # k=3 branch: taps 1..3 -> rows Cin:4*Cin, cols [OCL:2*OCL]
    wc = wc.at[IN_CHANNELS:4 * IN_CHANNELS, OCL:2 * OCL].set(
        w3.reshape(3 * IN_CHANNELS, OCL))
    # k=1 branch: center tap (2) -> rows 2*Cin:3*Cin, cols [0:OCL]
    wc = wc.at[2 * IN_CHANNELS:3 * IN_CHANNELS, 0:OCL].set(
        w1.reshape(IN_CHANNELS, OCL))
    bc = jnp.concatenate([b1, b3, b5], axis=1)            # (1, 12)
    slab_a = jnp.concatenate([wc, bc], axis=0)            # (21, 12)
    slab_b = jnp.concatenate([wl, bl], axis=0)            # (13, 20)
    return slab_a, slab_b


def user_net_forward(x_ncw, params):
    """x_ncw: (N, Cin, L) float32, same convention as the PyTorch module."""
    slab_a, slab_b = pack_params(params)

    x_nlc = jnp.transpose(x_ncw, (0, 2, 1))                        # (N, L, Cin)
    x_pad = jnp.pad(x_nlc, ((0, 0), (PAD_MAX, PAD_MAX), (0, 0)))   # (N, LP, Cin)
    # im2col for the widest (k=5) window; narrower convs hit zeroed weight rows.
    x_im2col = jnp.concatenate(
        [x_pad[:, j:j + L, :] for j in range(KMAX)], axis=-1)      # (N, L, KDIM)
    x_im2col = x_im2col.reshape(N * L, KDIM)                       # (N*L, KDIM)

    out = pl.pallas_call(
        user_net_kernel,
        out_shape=jax.ShapeDtypeStruct((N, LIN_OUT), jnp.float32),
        grid_spec=pltpu.PrefetchScalarGridSpec(
            num_scalar_prefetch=0,
            grid=(1,),                                             # single step
            in_specs=[
                pl.BlockSpec((N * L, KDIM), lambda i: (0, 0)),
                pl.BlockSpec((KDIM + 1, OUT_CHANNELS), lambda i: (0, 0)),
                pl.BlockSpec((OUT_CHANNELS + 1, LIN_OUT), lambda i: (0, 0)),
            ],
            out_specs=pl.BlockSpec((N, LIN_OUT), lambda i: (0, 0)),
        ),
        compiler_params=pltpu.CompilerParams(dimension_semantics=("arbitrary",)),
    )(x_im2col, slab_a, slab_b)
    return out                                                     # (N, 20)


def reference_forward(x_ncw, params):
    """Pure-JAX reference mirroring the PyTorch forward."""
    w1, b1, w3, b3, w5, b5, wl, bl = params

    def conv1d(x, w_kco, b, pad):
        w_oik = jnp.transpose(w_kco, (2, 1, 0))          # (Ocl, Cin, k)
        y = jax.lax.conv_general_dilated(
            x, w_oik, window_strides=(1,), padding=[(pad, pad)],
            dimension_numbers=('NCH', 'OIH', 'NCH'))
        return jax.nn.sigmoid(y + b.reshape(1, -1, 1))

    y1 = conv1d(x_ncw, w1, b1, 0)
    y3 = conv1d(x_ncw, w3, b3, 1)
    y5 = conv1d(x_ncw, w5, b5, 2)
    cat = jnp.concatenate([y1, y3, y5], axis=1)          # (N, Cout, L)
    m = jnp.max(cat, axis=2)                             # (N, Cout)
    return jax.nn.sigmoid(m @ wl + bl)                   # (N, 20)


def init_params(key):
    ks = jax.random.split(key, 8)

    def u(k, shape, fan_in):
        bound = 1.0 / np.sqrt(fan_in)
        return jax.random.uniform(k, shape, jnp.float32, -bound, bound)

    w1 = u(ks[0], (1, IN_CHANNELS, OCL), IN_CHANNELS * 1)
    b1 = u(ks[1], (1, OCL), IN_CHANNELS * 1)
    w3 = u(ks[2], (3, IN_CHANNELS, OCL), IN_CHANNELS * 3)
    b3 = u(ks[3], (1, OCL), IN_CHANNELS * 3)
    w5 = u(ks[4], (5, IN_CHANNELS, OCL), IN_CHANNELS * 5)
    b5 = u(ks[5], (1, OCL), IN_CHANNELS * 5)
    wl = u(ks[6], (OUT_CHANNELS, LIN_OUT), OUT_CHANNELS)
    bl = u(ks[7], (1, LIN_OUT), OUT_CHANNELS)
    return (w1, b1, w3, b3, w5, b5, wl, bl)


if __name__ == "__main__":
    key = jax.random.PRNGKey(0)
    kx, kp = jax.random.split(key)
    x = jax.random.normal(kx, (N, IN_CHANNELS, L), jnp.float32)
    params = init_params(kp)

    out = user_net_forward(x, params)
    out = jax.block_until_ready(out)

    ref = reference_forward(x, params)
    np.testing.assert_allclose(np.asarray(out), np.asarray(ref), rtol=1e-5, atol=1e-5)
    print("KERNEL_OK")
</pallas_src>

<mosaic_0001>
module attributes {stable_mosaic.version = 11 : i64} {
  func.func @user_net_kernel(%arg0: i32, %arg1: memref<32x20xf32, #tpu.memory_space<vmem>>, %arg2: memref<21x12xf32, #tpu.memory_space<vmem>>, %arg3: memref<13x20xf32, #tpu.memory_space<vmem>>, %arg4: memref<2x20xf32, #tpu.memory_space<vmem>>) attributes {dimension_semantics = [#tpu.dimension_semantics<arbitrary>], iteration_bounds = array<i64: 1>, scalar_prefetch = 0 : i64, scratch_operands = 0 : i64, tpu.core_type = #tpu.core_type<tc>, window_params = [{pipeline_mode = #tpu.pipeline_mode<synchronous>, transform_indices = @transform_0, window_bounds = array<i64: 32, 20>}, {pipeline_mode = #tpu.pipeline_mode<synchronous>, transform_indices = @transform_1, window_bounds = array<i64: 21, 12>}, {pipeline_mode = #tpu.pipeline_mode<synchronous>, transform_indices = @transform_2, window_bounds = array<i64: 13, 20>}, {pipeline_mode = #tpu.pipeline_mode<synchronous>, transform_indices = @transform_3, window_bounds = array<i64: 2, 20>}]} {
    %c0 = arith.constant 0 : index
    %c0_0 = arith.constant 0 : index
    %0 = vector.load %arg1[%c0, %c0_0] : memref<32x20xf32, #tpu.memory_space<vmem>>, vector<32x20xf32>
    %c0_1 = arith.constant 0 : index
    %c0_2 = arith.constant 0 : index
    %1 = vector.load %arg2[%c0_1, %c0_2] : memref<21x12xf32, #tpu.memory_space<vmem>>, vector<21x12xf32>
    %c0_3 = arith.constant 0 : index
    %c0_4 = arith.constant 0 : index
    %2 = vector.load %arg3[%c0_3, %c0_4] : memref<13x20xf32, #tpu.memory_space<vmem>>, vector<13x20xf32>
    %3 = vector.extract_strided_slice %1 {offsets = [0, 0], sizes = [20, 12], strides = [1, 1]} : vector<21x12xf32> to vector<20x12xf32>
    %4 = vector.extract_strided_slice %1 {offsets = [20, 0], sizes = [1, 12], strides = [1, 1]} : vector<21x12xf32> to vector<1x12xf32>
    %cst = arith.constant dense<0.000000e+00> : vector<32x12xf32>
    %5 = tpu.matmul %0, %3, %cst {dimension_numbers = #tpu.dot_dimension_numbers<[1], [0], [0], [1], [0, 0, 1, 1], [], []>} : vector<32x20xf32>, vector<20x12xf32>, vector<32x12xf32> -> vector<32x12xf32>
    %6 = vector.broadcast %4 : vector<1x12xf32> to vector<32x12xf32>
    %7 = arith.addf %5, %6 : vector<32x12xf32>
    %8 = arith.negf %7 : vector<32x12xf32>
    %9 = math.exp %8 : vector<32x12xf32>
    %cst_5 = arith.constant 1.000000e+00 : f32
    %10 = vector.broadcast %cst_5 : f32 to vector<32x12xf32>
    %11 = arith.addf %10, %9 : vector<32x12xf32>
    %12 = arith.divf %10, %11 : vector<32x12xf32>
    %13 = vector.extract_strided_slice %12 {offsets = [0, 0], sizes = [16, 12], strides = [1, 1]} : vector<32x12xf32> to vector<16x12xf32>
    %cst_6 = arith.constant dense<0xFF800000> : vector<12xf32>
    %14 = vector.multi_reduction <maximumf>, %13, %cst_6 [0] : vector<16x12xf32> to vector<12xf32>
    %15 = vector.shape_cast %14 : vector<12xf32> to vector<1x12xf32>
    %16 = vector.extract_strided_slice %12 {offsets = [16, 0], sizes = [16, 12], strides = [1, 1]} : vector<32x12xf32> to vector<16x12xf32>
    %cst_7 = arith.constant dense<0xFF800000> : vector<12xf32>
    %17 = vector.multi_reduction <maximumf>, %16, %cst_7 [0] : vector<16x12xf32> to vector<12xf32>
    %18 = vector.shape_cast %17 : vector<12xf32> to vector<1x12xf32>
    %19 = tpu.concatenate %15, %18 in 0 : vector<1x12xf32>, vector<1x12xf32> -> vector<2x12xf32>
    %20 = vector.extract_strided_slice %2 {offsets = [0, 0], sizes = [12, 20], strides = [1, 1]} : vector<13x20xf32> to vector<12x20xf32>
    %21 = vector.extract_strided_slice %2 {offsets = [12, 0], sizes = [1, 20], strides = [1, 1]} : vector<13x20xf32> to vector<1x20xf32>
    %cst_8 = arith.constant dense<0.000000e+00> : vector<2x20xf32>
    %22 = tpu.matmul %19, %20, %cst_8 {dimension_numbers = #tpu.dot_dimension_numbers<[1], [0], [0], [1], [0, 0, 1, 1], [], []>} : vector<2x12xf32>, vector<12x20xf32>, vector<2x20xf32> -> vector<2x20xf32>
    %23 = vector.broadcast %21 : vector<1x20xf32> to vector<2x20xf32>
    %24 = arith.addf %22, %23 : vector<2x20xf32>
    %25 = arith.negf %24 : vector<2x20xf32>
    %26 = math.exp %25 : vector<2x20xf32>
    %cst_9 = arith.constant 1.000000e+00 : f32
    %27 = vector.broadcast %cst_9 : f32 to vector<2x20xf32>
    %28 = arith.addf %27, %26 : vector<2x20xf32>
    %29 = arith.divf %27, %28 : vector<2x20xf32>
    %c0_10 = arith.constant 0 : index
    %c0_11 = arith.constant 0 : index
    %30 = vector.load %arg4[%c0_10, %c0_11] : memref<2x20xf32, #tpu.memory_space<vmem>>, vector<2x20xf32>
    tpu.vector_store %arg4[%c0_10, %c0_11], %29 {strides = array<i32>} : memref<2x20xf32, #tpu.memory_space<vmem>>, vector<2x20xf32>,
    return
  }
  func.func @transform_0(%arg0: i32) -> (i32, i32) {
    %c0_i32 = arith.constant 0 : i32
    %c0_i32_0 = arith.constant 0 : i32
    %c0_i32_1 = arith.constant 0 : i32
    return %c0_i32, %c0_i32_0 : i32, i32
  }
  func.func @transform_1(%arg0: i32) -> (i32, i32) {
    %c0_i32 = arith.constant 0 : i32
    %c0_i32_0 = arith.constant 0 : i32
    %c0_i32_1 = arith.constant 0 : i32
    return %c0_i32, %c0_i32_0 : i32, i32
  }
  func.func @transform_2(%arg0: i32) -> (i32, i32) {
    %c0_i32 = arith.constant 0 : i32
    %c0_i32_0 = arith.constant 0 : i32
    %c0_i32_1 = arith.constant 0 : i32
    return %c0_i32, %c0_i32_0 : i32, i32
  }
  func.func @transform_3(%arg0: i32) -> (i32, i32) {
    %c0_i32 = arith.constant 0 : i32
    %c0_i32_0 = arith.constant 0 : i32
    %c0_i32_1 = arith.constant 0 : i32
    return %c0_i32, %c0_i32_0 : i32, i32
  }
}

</mosaic_0001>

<llo_original>
// kernel: tpu_custom_call.1
$region0: #{tpu_custom_call.1}
  #allocation0 [shape = 'u32[]', space=smem, size = 0x4, offset = 0x4, fixed_abs, tag = 'smem constant byte address 0x4 - core index']
  #allocation1 [shape = 'u32[72,128]{1,0:T(1,128)}', space=vmem, size = 0x9000, scoped, tag = 'internal scratch']
  %s0 = inlined_call_operand.vmem [shape: f32[32,20], index: 0, kind: input, shape index: {}]
  %s1 = inlined_call_operand.vmem [shape: f32[21,12], index: 1, kind: input, shape index: {}]
  %s2 = inlined_call_operand.vmem [shape: f32[13,20], index: 2, kind: input, shape index: {}]
  %s3 = inlined_call_operand.hbm [shape: f32[2,20], index: 3, kind: output, shape index: {}]
  %s4 = sld [smem:[#allocation0]]
  $region22: #{tpu_custom_call.1} parent=0
    _
  %s6 = ssub.s32 1, %s4
  %s7 = scalar_select 0, %s6, %s4
  $region1: #{tpu_custom_call.1} parent=0
    #allocation2 [shape = 'u8[1024]{0}', space=vmem, size = 0x400, scoped, tag = 'output window, operand 0, single buffered']
    #allocation3 [shape = 's32[1]{0}', space=sflag, size = 0x4, scoped, tag = 'scoped memory for tpu_custom_call.1']
    %8 = vsyncpa [#allocation3], 0
    // Predicated region
    $region2: #{tpu_custom_call.1} parent=1 // pred_check
      _
    $region3: #{tpu_custom_call.1} parent=1 // pred_check_branch
      %10 = sbr.rel (0) target = $region5
    $region4: #{tpu_custom_call.1} parent=1 // pred_region
      _
    $region5: #{tpu_custom_call.1} parent=1 // pred_fallthru
      _
    // Predicated region
    $region6: #{tpu_custom_call.1} parent=1 // pred_check
      _
    $region7: #{tpu_custom_call.1} parent=1 // pred_check_branch
      %12 = sbr.rel (0) target = $region9
    $region8: #{tpu_custom_call.1} parent=1 // pred_region
      _
    $region9: #{tpu_custom_call.1} parent=1 // pred_fallthru
      _
    // Predicated region
    $region10: #{tpu_custom_call.1} parent=1 // pred_check
      _
    $region11: #{tpu_custom_call.1} parent=1 // pred_check_branch
      %14 = sbr.rel (0) target = $region13
    $region12: #{tpu_custom_call.1} parent=1 // pred_region
      _
    $region13: #{tpu_custom_call.1} parent=1 // pred_fallthru
      _
    %v15 = vld [vmem:[%s0] sm:$0xff]
    %v16 = vld [vmem:[%s0 + $0x8] sm:$0xff]
    %v17 = vld [vmem:[%s0 + $0x10] sm:$0xff]
    %v18 = vld [vmem:[%s0 + $0x18] sm:$0xff]
    %v19 = vld [vmem:[%s1] sm:$0xff]
    %v20 = vld [vmem:[%s1 + $0x8] sm:$0xff]
    %v21 = vld [vmem:[%s1 + $0x10] sm:$0x1f]
    %v22 = vld [vmem:[%s2] sm:$0xff]
    %v23 = vld [vmem:[%s2 + $0x8] sm:$0x1f]
    %v24 = vperm.slane %v21, 4
    %vm25 = vcmask 162816
    %v27 = vsel %vm25, %v15, 0
    %v30 = vsel %vm25, %v16, 0
    %v33 = vsel %vm25, %v17, 0
    %v36 = vsel %vm25, %v18, 0
    %vm38 = vcmask 1043456
    %v40 = vsel %vm38, %v21, 0
    %42 = vmatpush.msra.mxu0 0.0
    %43 = vmatpush.msra.mxu0 0.0
    %44 = vmatpush.msra.mxu0 0.0
    %45 = vmatpush.msra.mxu0 0.0
    %46 = vmatpush.msra.mxu0 0.0
    %47 = vmatpush.msra.mxu0 0.0
    %48 = vmatpush.msra.mxu0 0.0
    %49 = vmatpush.msra.mxu0 0.0
    %50 = vmatpush.msra.mxu0 0.0
    %51 = vmatpush.msra.mxu0 0.0
    %52 = vmatpush.msra.mxu0 0.0
    %53 = vmatpush.msra.mxu0 0.0
    %54 = vmatpush.msra.mxu0 0.0
    %55 = vmatpush.msra.mxu0 %v40
    %56 = vmatpush.msra.mxu0 %v20
    %57 = vmatpush.msra.mxu0 %v19
    %58 = vmatmul.f32.gmra.mxu0 %v27
    %v59 = vpop.f32.mrf.mxu0
    %v60 = vadd.f32 %v24, %v59
    %61 = vmatmul.f32.gmra.mxu0 %v30
    %v62 = vpop.f32.mrf.mxu0
    %v63 = vadd.f32 %v24, %v62
    %64 = vmatmul.f32.gmra.mxu0 %v33
    %v65 = vpop.f32.mrf.mxu0
    %v66 = vadd.f32 %v24, %v65
    %67 = vmatmul.f32.gmra.mxu0 %v36
    %v68 = vpop.f32.mrf.mxu0
    %v69 = vadd.f32 %v24, %v68
    %70 = vdwg.mxu0
    %v71 = vxor.u32 %v60, 2147483648
    %v72 = vxor.u32 %v63, 2147483648
    %v73 = vxor.u32 %v66, 2147483648
    %v74 = vxor.u32 %v69, 2147483648
    %v75 = vmul.f32 %v71, 1.442695
    %v76 = vpow.pop %v75
    %v77 = vmul.f32 %v72, 1.442695
    %v78 = vpow.pop %v77
    %v79 = vmul.f32 %v73, 1.442695
    %v80 = vpow.pop %v79
    %v81 = vmul.f32 %v74, 1.442695
    %v82 = vpow.pop %v81
    %v83 = vadd.f32 %v76, 1.0
    %v84 = vadd.f32 %v78, 1.0
    %v85 = vadd.f32 %v80, 1.0
    %v86 = vadd.f32 %v82, 1.0
    %v87 = vrcp.pop %v83
    %v88 = vmul.f32 %v83, %v87
    %v89 = vsub.f32 1.0, %v88
    %v90 = vmul.f32 %v87, %v89
    %v91 = vadd.f32 %v87, %v90
    %vm92 = vweird.f32 %v83
    %vm93 = vweird.f32 %v87
    %vm94 = vmor %vm92, %vm93
    %v95 = vsel %vm94, %v87, %v91
    %v96 = vand.u32 2147483647, %v83
    %vm97 = vcmp.eq.f32.partialorder %v96, 8.507059e+37
    %v98 = vand.u32 %v83, 2147483648
    %v99 = vor.u32 1.1754944e-38, %v98
    %v100 = vsel %vm97, %v99, %v95
    %v101 = vmul.f32 1.0, %v100
    %v102 = vrcp.pop %v84
    %v103 = vmul.f32 %v84, %v102
    %v104 = vsub.f32 1.0, %v103
    %v105 = vmul.f32 %v102, %v104
    %v106 = vadd.f32 %v102, %v105
    %vm107 = vweird.f32 %v84
    %vm108 = vweird.f32 %v102
    %vm109 = vmor %vm107, %vm108
    %v110 = vsel %vm109, %v102, %v106
    %v111 = vand.u32 2147483647, %v84
    %vm112 = vcmp.eq.f32.partialorder %v111, 8.507059e+37
    %v113 = vand.u32 %v84, 2147483648
    %v114 = vor.u32 1.1754944e-38, %v113
    %v115 = vsel %vm112, %v114, %v110
    %v116 = vmul.f32 1.0, %v115
    %v117 = vrcp.pop %v85
    %v118 = vmul.f32 %v85, %v117
    %v119 = vsub.f32 1.0, %v118
    %v120 = vmul.f32 %v117, %v119
    %v121 = vadd.f32 %v117, %v120
    %vm122 = vweird.f32 %v85
    %vm123 = vweird.f32 %v117
    %vm124 = vmor %vm122, %vm123
    %v125 = vsel %vm124, %v117, %v121
    %v126 = vand.u32 2147483647, %v85
    %vm127 = vcmp.eq.f32.partialorder %v126, 8.507059e+37
    %v128 = vand.u32 %v85, 2147483648
    %v129 = vor.u32 1.1754944e-38, %v128
    %v130 = vsel %vm127, %v129, %v125
    %v131 = vmul.f32 1.0, %v130
    %v132 = vrcp.pop %v86
    %v133 = vmul.f32 %v86, %v132
    %v134 = vsub.f32 1.0, %v133
    %v135 = vmul.f32 %v132, %v134
    %v136 = vadd.f32 %v132, %v135
    %vm137 = vweird.f32 %v86
    %vm138 = vweird.f32 %v132
    %vm139 = vmor %vm137, %vm138
    %v140 = vsel %vm139, %v132, %v136
    %v141 = vand.u32 2147483647, %v86
    %vm142 = vcmp.eq.f32.partialorder %v141, 8.507059e+37
    %v143 = vand.u32 %v86, 2147483648
    %v144 = vor.u32 1.1754944e-38, %v143
    %v145 = vsel %vm142, %v144, %v140
    %v146 = vmul.f32 1.0, %v145
    %vm147 = vcmask 97280
    %v148 = vsel %vm147, %v101, -inf
    %v149 = vsel %vm147, %v116, -inf
    %v150 = vmax.f32 %v148, %v149
    %v151 = vrot.slane %v150, 4
    %v152 = vmax.f32 %v150, %v151
    %v153 = vrot.slane %v152, 2
    %v154 = vmax.f32 %v152, %v153
    %v155 = vrot.slane %v154, 1
    %v156 = vmax.f32 %v154, %v155
    %v157 = vsel %vm147, %v131, -inf
    %v158 = vsel %vm147, %v146, -inf
    %v159 = vmax.f32 %v157, %v158
    %v160 = vrot.slane %v159, 4
    %v161 = vmax.f32 %v159, %v160
    %v162 = vrot.slane %v161, 2
    %v163 = vmax.f32 %v161, %v162
    %v164 = vrot.slane %v163, 1
    %v165 = vmax.f32 %v163, %v164
    %vm166 = vcmask 1040384
    %v167 = vsel %vm166, %v156, %v165
    %v168 = vperm.slane %v23, 4
    %v170 = vsel %vm147, %v167, 0
    %v173 = vsel %vm38, %v23, 0
    %175 = vmatpush.msra.mxu0 0.0
    %176 = vmatpush.msra.mxu0 0.0
    %177 = vmatpush.msra.mxu0 0.0
    %178 = vmatpush.msra.mxu0 0.0
    %179 = vmatpush.msra.mxu0 0.0
    %180 = vmatpush.msra.mxu0 0.0
    %181 = vmatpush.msra.mxu0 0.0
    %182 = vmatpush.msra.mxu0 0.0
    %183 = vmatpush.msra.mxu0 0.0
    %184 = vmatpush.msra.mxu0 0.0
    %185 = vmatpush.msra.mxu0 0.0
    %186 = vmatpush.msra.mxu0 0.0
    %187 = vmatpush.msra.mxu0 0.0
    %188 = vmatpush.msra.mxu0 0.0
    %189 = vmatpush.msra.mxu0 %v173
    %190 = vmatpush.msra.mxu0 %v22
    %191 = vmatmul.f32.gmra.mxu0 %v170
    %v192 = vpop.f32.mrf.mxu0
    %v193 = vadd.f32 %v168, %v192
    %194 = vdwg.mxu0
    %v195 = vxor.u32 %v193, 2147483648
    %v196 = vmul.f32 %v195, 1.442695
    %v197 = vpow.pop %v196
    %v198 = vadd.f32 %v197, 1.0
    %v199 = vrcp.pop %v198
    %v200 = vmul.f32 %v198, %v199
    %v201 = vsub.f32 1.0, %v200
    %v202 = vmul.f32 %v199, %v201
    %v203 = vadd.f32 %v199, %v202
    %vm204 = vweird.f32 %v198
    %vm205 = vweird.f32 %v199
    %vm206 = vmor %vm204, %vm205
    %v207 = vsel %vm206, %v199, %v203
    %v208 = vand.u32 2147483647, %v198
    %vm209 = vcmp.eq.f32.partialorder %v208, 8.507059e+37
    %v210 = vand.u32 %v198, 2147483648
    %v211 = vor.u32 1.1754944e-38, %v210
    %v212 = vsel %vm209, %v211, %v207
    %v213 = vmul.f32 1.0, %v212
    %vm214 = vcmask 156672
    %215 = vst.msk [vmem:[#allocation2] sm:$0x3] %vm214, %v213
    // Predicated region
    $region14: #{tpu_custom_call.1} parent=1 // pred_check
      _
    $region15: #{tpu_custom_call.1} parent=1 // pred_check_branch
      %217 = sbr.rel (0) target = $region17
    $region16: #{tpu_custom_call.1} parent=1 // pred_region
      %219 = vsyncadd [#allocation3], 0
      %s221 = sshll.u32 [#allocation2], 4
      %s222 = int_to_ptr.vmem [resolvable:$true] %s221
      %s223 = sshll.u32 %s3, 4
      %s224 = int_to_ptr.hbm [resolvable:$true] %s223
      %226 = dma.vmem_to_hbm [thread:$0]  %s222, 32, %s224, [#allocation3]
    $region17: #{tpu_custom_call.1} parent=1 // pred_fallthru
      _
    // Predicated region
    $region18: #{tpu_custom_call.1} parent=1 // pred_check
      _
    $region19: #{tpu_custom_call.1} parent=1 // pred_check_branch
      %228 = sbr.rel (0) target = $region21
    $region20: #{tpu_custom_call.1} parent=1 // pred_region
      %230 = dma.done [#allocation3], 32
    $region21: #{tpu_custom_call.1} parent=1 // pred_fallthru
      _
    %231 = vsyncpa [#allocation3], 1

</llo_original>
